<compile_context>
chip_gen: v5e
topology: v5e:2x2
jax: 0.10.0
libtpu: 0.0.40
codegen_flags: <defaults>
</compile_context>

<pallas_src>
import math
import functools

import jax
import jax.numpy as jnp
from jax.experimental import pallas as pl
from jax.experimental.pallas import tpu as pltpu

_GELU_C = math.sqrt(2.0 / math.pi)


def _gelu_f32(h):
    # tanh-approx GELU in f32: 0.5*h*(1 + tanh(sqrt(2/pi)*(h + 0.044715*h^3)))
    # tanh lowers to the EUP slot; h*h computed once and reused.
    h2 = h * h
    return 0.5 * h * (1.0 + jnp.tanh(_GELU_C * (h + 0.044715 * (h2 * h))))


def _ff_kernel_single(x_ref, w1_ref, b1_ref, w2_ref, b2_ref, o_ref):
    # Whole hidden dim resident: no accumulator scratch needed.
    #   x_ref: (tm, E)  w1_ref: (E, H)  b1_ref: (1, H)
    #   w2_ref: (H, E)  b2_ref: (1, E)  o_ref: (tm, E)
    h = jnp.dot(x_ref[...], w1_ref[...], preferred_element_type=jnp.float32)
    h = h + b1_ref[...].astype(jnp.float32)
    g = _gelu_f32(h)
    out = jnp.dot(g.astype(w2_ref.dtype), w2_ref[...],
                  preferred_element_type=jnp.float32)
    o_ref[...] = (out + b2_ref[...].astype(jnp.float32)).astype(o_ref.dtype)


def _ff_kernel_tiled(x_ref, w1_ref, b1_ref, w2_ref, b2_ref, o_ref, acc_ref):
    # Hidden dim tiled along grid axis 1 (reduction); f32 VMEM accumulator.
    #   x_ref: (tm, E)   w1_ref: (E, th)  b1_ref: (1, th)
    #   w2_ref: (th, E)  b2_ref: (1, E)   o_ref/acc_ref: (tm, E)
    j = pl.program_id(1)

    @pl.when(j == 0)
    def _init():
        acc_ref[...] = jnp.zeros_like(acc_ref)

    h = jnp.dot(x_ref[...], w1_ref[...], preferred_element_type=jnp.float32)
    h = h + b1_ref[...].astype(jnp.float32)
    g = _gelu_f32(h)
    acc_ref[...] += jnp.dot(g.astype(w2_ref.dtype), w2_ref[...],
                            preferred_element_type=jnp.float32)

    @pl.when(j == pl.num_programs(1) - 1)
    def _finalize():
        o_ref[...] = (acc_ref[...]
                      + b2_ref[...].astype(jnp.float32)).astype(o_ref.dtype)


def _round_up(n, m):
    return (n + m - 1) // m * m


@functools.partial(jax.jit, static_argnames=("tm", "th"))
def feed_forward(x, w1, b1, w2, b2, *, tm=256, th=512):
    """x: (B, S, E); w1: (E, H); b1: (H,); w2: (H, E); b2: (E,)."""
    B, S, E = x.shape
    E_in, H = w1.shape
    assert E_in == E and w2.shape == (H, E)
    assert b1.shape == (H,) and b2.shape == (E,)

    M = B * S

    # Row tile: as large as requested but no larger than the (aligned) row
    # count; bf16/fp16 activations want 16-row sublane packing, f32 needs 8.
    row_align = 8 if jnp.dtype(x.dtype).itemsize == 4 else 16
    tm_eff = max(row_align, min(tm, _round_up(M, row_align)))
    tm_eff = _round_up(tm_eff, row_align)
    M_pad = _round_up(M, tm_eff)

    # Lane-dense layout: pad E up to a multiple of 128 (zero pad -> exact
    # result on the first E columns; the rest are sliced off below).
    E_pad = _round_up(E, 128)

    # Hidden tile: multiple of 128 that divides H; otherwise keep H resident.
    th_eff = min(th, H)
    if H % th_eff != 0 or (th_eff % 128 != 0 and th_eff != H):
        th_eff = H
    grid_h = H // th_eff

    x2 = x.reshape(M, E)
    if M_pad != M or E_pad != E:
        x2 = jnp.pad(x2, ((0, M_pad - M), (0, E_pad - E)))
    if E_pad != E:
        w1 = jnp.pad(w1, ((0, E_pad - E), (0, 0)))          # extra zero rows
        w2 = jnp.pad(w2, ((0, 0), (0, E_pad - E)))          # extra zero cols
        b2 = jnp.pad(b2, ((0, E_pad - E),))
    b1_2 = b1.reshape(1, H)
    b2_2 = b2.reshape(1, E_pad)

    if grid_h == 1:
        kernel = _ff_kernel_single
        grid = (M_pad // tm_eff,)
        in_specs = [
            pl.BlockSpec((tm_eff, E_pad), lambda i: (i, 0)),   # activations
            pl.BlockSpec((E_pad, H), lambda i: (0, 0)),        # w1 (resident)
            pl.BlockSpec((1, H), lambda i: (0, 0)),            # b1
            pl.BlockSpec((H, E_pad), lambda i: (0, 0)),        # w2 (resident)
            pl.BlockSpec((1, E_pad), lambda i: (0, 0)),        # b2
        ]
        out_specs = pl.BlockSpec((tm_eff, E_pad), lambda i: (i, 0))
        scratch_shapes = []
        dim_sem = ("parallel",)
    else:
        kernel = _ff_kernel_tiled
        grid = (M_pad // tm_eff, grid_h)
        in_specs = [
            pl.BlockSpec((tm_eff, E_pad), lambda i, j: (i, 0)),  # activations
            pl.BlockSpec((E_pad, th_eff), lambda i, j: (0, j)),  # w1 H-tile
            pl.BlockSpec((1, th_eff), lambda i, j: (0, j)),      # b1 H-tile
            pl.BlockSpec((th_eff, E_pad), lambda i, j: (j, 0)),  # w2 H-tile
            pl.BlockSpec((1, E_pad), lambda i, j: (0, 0)),       # b2
        ]
        out_specs = pl.BlockSpec((tm_eff, E_pad), lambda i, j: (i, 0))
        scratch_shapes = [pltpu.VMEM((tm_eff, E_pad), jnp.float32)]
        dim_sem = ("parallel", "arbitrary")

    out2 = pl.pallas_call(
        kernel,
        out_shape=jax.ShapeDtypeStruct((M_pad, E_pad), x.dtype),
        grid_spec=pltpu.PrefetchScalarGridSpec(
            num_scalar_prefetch=0,
            grid=grid,
            in_specs=in_specs,
            out_specs=out_specs,
            scratch_shapes=scratch_shapes,
        ),
        compiler_params=pltpu.CompilerParams(
            dimension_semantics=dim_sem,
            vmem_limit_bytes=64 * 1024 * 1024,
        ),
    )(x2, w1, b1_2, w2, b2_2)

    out2 = out2[:M, :E]
    return out2.reshape(B, S, E)


def _reference(x, w1, b1, w2, b2):
    h = jnp.einsum("bse,eh->bsh", x.astype(jnp.float32),
                   w1.astype(jnp.float32)) + b1.astype(jnp.float32)
    g = 0.5 * h * (1.0 + jnp.tanh(_GELU_C * (h + 0.044715 * h ** 3)))
    out = jnp.einsum("bsh,he->bse", g, w2.astype(jnp.float32)) + b2.astype(jnp.float32)
    return out.astype(x.dtype)


if __name__ == "__main__":
    # cfg['emb_dim'] = 32 -> hidden = 128.
    B, S, E = 2, 8, 32
    H = 4 * E

    key = jax.random.PRNGKey(0)
    kx, k1, k2, k3, k4 = jax.random.split(key, 5)

    x = jax.random.normal(kx, (B, S, E), dtype=jnp.float32)

    # Deterministic init mimicking nn.Linear's uniform(-1/sqrt(fan_in), 1/sqrt(fan_in)).
    bound1 = 1.0 / math.sqrt(E)
    w1 = jax.random.uniform(k1, (E, H), jnp.float32, -bound1, bound1)
    b1 = jax.random.uniform(k2, (H,), jnp.float32, -bound1, bound1)
    bound2 = 1.0 / math.sqrt(H)
    w2 = jax.random.uniform(k3, (H, E), jnp.float32, -bound2, bound2)
    b2 = jax.random.uniform(k4, (E,), jnp.float32, -bound2, bound2)

    out = feed_forward(x, w1, b1, w2, b2)
    out = jax.block_until_ready(out)

    ref = _reference(x, w1, b1, w2, b2)
    assert out.shape == (B, S, E)
    assert jnp.allclose(out, ref, atol=1e-5, rtol=1e-5), "mismatch vs reference"

    print("KERNEL_OK")
</pallas_src>

<mosaic_0001>
module attributes {stable_mosaic.version = 11 : i64} {
  func.func @_ff_kernel_single(%arg0: i32, %arg1: memref<16x128xf32, #tpu.memory_space<vmem>>, %arg2: memref<128x128xf32, #tpu.memory_space<vmem>>, %arg3: memref<1x128xf32, #tpu.memory_space<vmem>>, %arg4: memref<128x128xf32, #tpu.memory_space<vmem>>, %arg5: memref<1x128xf32, #tpu.memory_space<vmem>>, %arg6: memref<16x128xf32, #tpu.memory_space<vmem>>) attributes {dimension_semantics = [#tpu.dimension_semantics<parallel>], iteration_bounds = array<i64: 1>, scalar_prefetch = 0 : i64, scratch_operands = 0 : i64, tpu.core_type = #tpu.core_type<tc>, window_params = [{transform_indices = @transform_0, window_bounds = array<i64: 16, 128>}, {pipeline_mode = #tpu.pipeline_mode<synchronous>, transform_indices = @transform_1, window_bounds = array<i64: 128, 128>}, {pipeline_mode = #tpu.pipeline_mode<synchronous>, transform_indices = @transform_2, window_bounds = array<i64: 1, 128>}, {pipeline_mode = #tpu.pipeline_mode<synchronous>, transform_indices = @transform_3, window_bounds = array<i64: 128, 128>}, {pipeline_mode = #tpu.pipeline_mode<synchronous>, transform_indices = @transform_4, window_bounds = array<i64: 1, 128>}, {transform_indices = @transform_5, window_bounds = array<i64: 16, 128>}]} {
    %c0 = arith.constant 0 : index
    %c0_0 = arith.constant 0 : index
    %0 = vector.load %arg1[%c0, %c0_0] : memref<16x128xf32, #tpu.memory_space<vmem>>, vector<16x128xf32>
    %c0_1 = arith.constant 0 : index
    %c0_2 = arith.constant 0 : index
    %1 = vector.load %arg2[%c0_1, %c0_2] : memref<128x128xf32, #tpu.memory_space<vmem>>, vector<128x128xf32>
    %cst = arith.constant dense<0.000000e+00> : vector<16x128xf32>
    %2 = tpu.matmul %0, %1, %cst {dimension_numbers = #tpu.dot_dimension_numbers<[1], [0], [0], [1], [0, 0, 1, 1], [], []>} : vector<16x128xf32>, vector<128x128xf32>, vector<16x128xf32> -> vector<16x128xf32>
    %c0_3 = arith.constant 0 : index
    %c0_4 = arith.constant 0 : index
    %3 = vector.load %arg3[%c0_3, %c0_4] : memref<1x128xf32, #tpu.memory_space<vmem>>, vector<1x128xf32>
    %4 = vector.broadcast %3 : vector<1x128xf32> to vector<16x128xf32>
    %5 = arith.addf %2, %4 : vector<16x128xf32>
    %6 = arith.mulf %5, %5 : vector<16x128xf32>
    %cst_5 = arith.constant 5.000000e-01 : f32
    %7 = vector.broadcast %cst_5 : f32 to vector<16x128xf32>
    %8 = arith.mulf %7, %5 : vector<16x128xf32>
    %9 = arith.mulf %6, %5 : vector<16x128xf32>
    %cst_6 = arith.constant 4.471500e-02 : f32
    %10 = vector.broadcast %cst_6 : f32 to vector<16x128xf32>
    %11 = arith.mulf %10, %9 : vector<16x128xf32>
    %12 = arith.addf %5, %11 : vector<16x128xf32>
    %cst_7 = arith.constant 0.797884583 : f32
    %13 = vector.broadcast %cst_7 : f32 to vector<16x128xf32>
    %14 = arith.mulf %13, %12 : vector<16x128xf32>
    %15 = math.tanh %14 : vector<16x128xf32>
    %cst_8 = arith.constant 1.000000e+00 : f32
    %16 = vector.broadcast %cst_8 : f32 to vector<16x128xf32>
    %17 = arith.addf %16, %15 : vector<16x128xf32>
    %18 = arith.mulf %8, %17 : vector<16x128xf32>
    %c0_9 = arith.constant 0 : index
    %c0_10 = arith.constant 0 : index
    %19 = vector.load %arg4[%c0_9, %c0_10] : memref<128x128xf32, #tpu.memory_space<vmem>>, vector<128x128xf32>
    %cst_11 = arith.constant dense<0.000000e+00> : vector<16x128xf32>
    %20 = tpu.matmul %18, %19, %cst_11 {dimension_numbers = #tpu.dot_dimension_numbers<[1], [0], [0], [1], [0, 0, 1, 1], [], []>} : vector<16x128xf32>, vector<128x128xf32>, vector<16x128xf32> -> vector<16x128xf32>
    %c0_12 = arith.constant 0 : index
    %c0_13 = arith.constant 0 : index
    %21 = vector.load %arg5[%c0_12, %c0_13] : memref<1x128xf32, #tpu.memory_space<vmem>>, vector<1x128xf32>
    %22 = vector.broadcast %21 : vector<1x128xf32> to vector<16x128xf32>
    %23 = arith.addf %20, %22 : vector<16x128xf32>
    %c0_14 = arith.constant 0 : index
    %c0_15 = arith.constant 0 : index
    %24 = vector.load %arg6[%c0_14, %c0_15] : memref<16x128xf32, #tpu.memory_space<vmem>>, vector<16x128xf32>
    tpu.vector_store %arg6[%c0_14, %c0_15], %23 {strides = array<i32>} : memref<16x128xf32, #tpu.memory_space<vmem>>, vector<16x128xf32>,
    return
  }
  func.func @transform_0(%arg0: i32) -> (i32, i32) {
    %c0_i32 = arith.constant 0 : i32
    %c0_i32_0 = arith.constant 0 : i32
    return %arg0, %c0_i32 : i32, i32
  }
  func.func @transform_1(%arg0: i32) -> (i32, i32) {
    %c0_i32 = arith.constant 0 : i32
    %c0_i32_0 = arith.constant 0 : i32
    %c0_i32_1 = arith.constant 0 : i32
    return %c0_i32, %c0_i32_0 : i32, i32
  }
  func.func @transform_2(%arg0: i32) -> (i32, i32) {
    %c0_i32 = arith.constant 0 : i32
    %c0_i32_0 = arith.constant 0 : i32
    %c0_i32_1 = arith.constant 0 : i32
    return %c0_i32, %c0_i32_0 : i32, i32
  }
  func.func @transform_3(%arg0: i32) -> (i32, i32) {
    %c0_i32 = arith.constant 0 : i32
    %c0_i32_0 = arith.constant 0 : i32
    %c0_i32_1 = arith.constant 0 : i32
    return %c0_i32, %c0_i32_0 : i32, i32
  }
  func.func @transform_4(%arg0: i32) -> (i32, i32) {
    %c0_i32 = arith.constant 0 : i32
    %c0_i32_0 = arith.constant 0 : i32
    %c0_i32_1 = arith.constant 0 : i32
    return %c0_i32, %c0_i32_0 : i32, i32
  }
  func.func @transform_5(%arg0: i32) -> (i32, i32) {
    %c0_i32 = arith.constant 0 : i32
    %c0_i32_0 = arith.constant 0 : i32
    return %arg0, %c0_i32 : i32, i32
  }
}

</mosaic_0001>

<llo_original>
// kernel: feed_forward.1
$region0: #{feed_forward.1}
  #allocation0 [shape = 'u32[]', space=smem, size = 0x4, offset = 0x4, fixed_abs, tag = 'smem constant byte address 0x4 - core index']
  #allocation1 [shape = 'u32[72,128]{1,0:T(1,128)}', space=vmem, size = 0x9000, scoped, tag = 'internal scratch']
  %s0 = inlined_call_operand.vmem [shape: f32[16,128], index: 0, kind: input, shape index: {}]
  %s1 = inlined_call_operand.vmem [shape: f32[128,128], index: 1, kind: input, shape index: {}]
  %s2 = inlined_call_operand.vmem [shape: f32[1,128], index: 2, kind: input, shape index: {}]
  %s3 = inlined_call_operand.vmem [shape: f32[128,128], index: 3, kind: input, shape index: {}]
  %s4 = inlined_call_operand.vmem [shape: f32[1,128], index: 4, kind: input, shape index: {}]
  %s5 = inlined_call_operand.vmem [shape: f32[16,128], index: 5, kind: output, shape index: {}]
  %s6 = sld [smem:[#allocation0]]
  $region30: #{feed_forward.1} parent=0
    _
  %s8 = ssub.s32 1, %s6
  %s9 = scalar_select 0, %s8, %s6
  // Predicated region
  $region2: #{feed_forward.1} parent=0 // pred_check
    _
  $region3: #{feed_forward.1} parent=0 // pred_check_branch
    %11 = sbr.rel (0) target = $region5
  $region4: #{feed_forward.1} parent=0 // pred_region
    _
  $region5: #{feed_forward.1} parent=0 // pred_fallthru
    _
  // Predicated region
  $region6: #{feed_forward.1} parent=0 // pred_check
    _
  $region7: #{feed_forward.1} parent=0 // pred_check_branch
    %13 = sbr.rel (0) target = $region9
  $region8: #{feed_forward.1} parent=0 // pred_region
    _
  $region9: #{feed_forward.1} parent=0 // pred_fallthru
    _
  // Predicated region
  $region10: #{feed_forward.1} parent=0 // pred_check
    _
  $region11: #{feed_forward.1} parent=0 // pred_check_branch
    %15 = sbr.rel (0) target = $region13
  $region12: #{feed_forward.1} parent=0 // pred_region
    _
  $region13: #{feed_forward.1} parent=0 // pred_fallthru
    _
  // Predicated region
  $region14: #{feed_forward.1} parent=0 // pred_check
    _
  $region15: #{feed_forward.1} parent=0 // pred_check_branch
    %17 = sbr.rel (0) target = $region17
  $region16: #{feed_forward.1} parent=0 // pred_region
    _
  $region17: #{feed_forward.1} parent=0 // pred_fallthru
    _
  // Predicated region
  $region18: #{feed_forward.1} parent=0 // pred_check
    _
  $region19: #{feed_forward.1} parent=0 // pred_check_branch
    %19 = sbr.rel (0) target = $region21
  $region20: #{feed_forward.1} parent=0 // pred_region
    _
  $region21: #{feed_forward.1} parent=0 // pred_fallthru
    _
  %v20 = vld [vmem:[%s0] sm:$0xff]
  %v21 = vld [vmem:[%s0 + $0x8] sm:$0xff]
  %v22 = vld [vmem:[%s1] sm:$0xff]
  %v23 = vld [vmem:[%s1 + $0x8] sm:$0xff]
  %v24 = vld [vmem:[%s1 + $0x10] sm:$0xff]
  %v25 = vld [vmem:[%s1 + $0x18] sm:$0xff]
  %v26 = vld [vmem:[%s1 + $0x20] sm:$0xff]
  %v27 = vld [vmem:[%s1 + $0x28] sm:$0xff]
  %v28 = vld [vmem:[%s1 + $0x30] sm:$0xff]
  %v29 = vld [vmem:[%s1 + $0x38] sm:$0xff]
  %v30 = vld [vmem:[%s1 + $0x40] sm:$0xff]
  %v31 = vld [vmem:[%s1 + $0x48] sm:$0xff]
  %v32 = vld [vmem:[%s1 + $0x50] sm:$0xff]
  %v33 = vld [vmem:[%s1 + $0x58] sm:$0xff]
  %v34 = vld [vmem:[%s1 + $0x60] sm:$0xff]
  %v35 = vld [vmem:[%s1 + $0x68] sm:$0xff]
  %v36 = vld [vmem:[%s1 + $0x70] sm:$0xff]
  %v37 = vld [vmem:[%s1 + $0x78] sm:$0xff]
  %v38 = vld [vmem:[%s2] sm:$0x1]
  %v40 = vperm.slane %v38, 0
  %42 = vmatpush.msra.mxu0 %v37
  %43 = vmatpush.msra.mxu0 %v36
  %44 = vmatpush.msra.mxu0 %v35
  %45 = vmatpush.msra.mxu0 %v34
  %46 = vmatpush.msra.mxu0 %v33
  %47 = vmatpush.msra.mxu0 %v32
  %48 = vmatpush.msra.mxu0 %v31
  %49 = vmatpush.msra.mxu0 %v30
  %50 = vmatpush.msra.mxu0 %v29
  %51 = vmatpush.msra.mxu0 %v28
  %52 = vmatpush.msra.mxu0 %v27
  %53 = vmatpush.msra.mxu0 %v26
  %54 = vmatpush.msra.mxu0 %v25
  %55 = vmatpush.msra.mxu0 %v24
  %56 = vmatpush.msra.mxu0 %v23
  %57 = vmatpush.msra.mxu0 %v22
  %58 = vmatmul.f32.gmra.mxu0 %v20
  %v59 = vpop.f32.mrf.mxu0
  %v60 = vadd.f32 %v40, %v59
  %61 = vmatmul.f32.gmra.mxu0 %v21
  %v62 = vpop.f32.mrf.mxu0
  %v63 = vadd.f32 %v40, %v62
  %64 = vdwg.mxu0
  %v65 = vmul.f32 %v60, %v60
  %v66 = vmul.f32 %v63, %v63
  %v67 = vmul.f32 %v60, 0.5
  %v68 = vmul.f32 %v63, 0.5
  %v69 = vmul.f32 %v65, %v60
  %v70 = vmul.f32 %v66, %v63
  %v71 = vmul.f32 %v69, 0.044715
  %v72 = vmul.f32 %v70, 0.044715
  %v73 = vadd.f32 %v60, %v71
  %v74 = vadd.f32 %v63, %v72
  %v75 = vmul.f32 %v73, 0.7978846
  %v76 = vmul.f32 %v74, 0.7978846
  %v77 = vtanh.pop %v75
  %v78 = vtanh.pop %v76
  %v79 = vadd.f32 %v77, 1.0
  %v80 = vadd.f32 %v78, 1.0
  %v81 = vmul.f32 %v67, %v79
  %v82 = vmul.f32 %v68, %v80
  %v83 = vld [vmem:[%s3] sm:$0xff]
  %v84 = vld [vmem:[%s3 + $0x8] sm:$0xff]
  %v85 = vld [vmem:[%s3 + $0x10] sm:$0xff]
  %v86 = vld [vmem:[%s3 + $0x18] sm:$0xff]
  %v87 = vld [vmem:[%s3 + $0x20] sm:$0xff]
  %v88 = vld [vmem:[%s3 + $0x28] sm:$0xff]
  %v89 = vld [vmem:[%s3 + $0x30] sm:$0xff]
  %v90 = vld [vmem:[%s3 + $0x38] sm:$0xff]
  %v91 = vld [vmem:[%s3 + $0x40] sm:$0xff]
  %v92 = vld [vmem:[%s3 + $0x48] sm:$0xff]
  %v93 = vld [vmem:[%s3 + $0x50] sm:$0xff]
  %v94 = vld [vmem:[%s3 + $0x58] sm:$0xff]
  %v95 = vld [vmem:[%s3 + $0x60] sm:$0xff]
  %v96 = vld [vmem:[%s3 + $0x68] sm:$0xff]
  %v97 = vld [vmem:[%s3 + $0x70] sm:$0xff]
  %v98 = vld [vmem:[%s3 + $0x78] sm:$0xff]
  %v99 = vld [vmem:[%s4] sm:$0x1]
  %v101 = vperm.slane %v99, 0
  %103 = vmatpush.msra.mxu0 %v98
  %104 = vmatpush.msra.mxu0 %v97
  %105 = vmatpush.msra.mxu0 %v96
  %106 = vmatpush.msra.mxu0 %v95
  %107 = vmatpush.msra.mxu0 %v94
  %108 = vmatpush.msra.mxu0 %v93
  %109 = vmatpush.msra.mxu0 %v92
  %110 = vmatpush.msra.mxu0 %v91
  %111 = vmatpush.msra.mxu0 %v90
  %112 = vmatpush.msra.mxu0 %v89
  %113 = vmatpush.msra.mxu0 %v88
  %114 = vmatpush.msra.mxu0 %v87
  %115 = vmatpush.msra.mxu0 %v86
  %116 = vmatpush.msra.mxu0 %v85
  %117 = vmatpush.msra.mxu0 %v84
  %118 = vmatpush.msra.mxu0 %v83
  %119 = vmatmul.f32.gmra.mxu0 %v81
  %v120 = vpop.f32.mrf.mxu0
  %v121 = vadd.f32 %v101, %v120
  %122 = vmatmul.f32.gmra.mxu0 %v82
  %v123 = vpop.f32.mrf.mxu0
  %v124 = vadd.f32 %v101, %v123
  %125 = vdwg.mxu0
  %126 = vst [vmem:[%s5] sm:$0xff] %v121
  %127 = vst [vmem:[%s5 + $0x8] sm:$0xff] %v124
  // Predicated region
  $region22: #{feed_forward.1} parent=0 // pred_check
    _
  $region23: #{feed_forward.1} parent=0 // pred_check_branch
    %129 = sbr.rel (0) target = $region25
  $region24: #{feed_forward.1} parent=0 // pred_region
    _
  $region25: #{feed_forward.1} parent=0 // pred_fallthru
    _
  // Predicated region
  $region26: #{feed_forward.1} parent=0 // pred_check
    _
  $region27: #{feed_forward.1} parent=0 // pred_check_branch
    %131 = sbr.rel (0) target = $region29
  $region28: #{feed_forward.1} parent=0 // pred_region
    _
  $region29: #{feed_forward.1} parent=0 // pred_fallthru
    _

</llo_original>
